<compile_context>
chip_gen: v5e
topology: v5e:2x2
jax: 0.10.0
libtpu: 0.0.40
codegen_flags: <defaults>
</compile_context>

<pallas_src>
import jax
import jax.numpy as jnp
import numpy as np
from jax.experimental import pallas as pl
from jax.experimental.pallas import tpu as pltpu


# ----------------------------------------------------------------------------
# Fused forward kernel: all layers for one lane-packed block of batch elements
# ----------------------------------------------------------------------------
def _make_forward_kernel(num_layers, pack_m, output_fun, compute_dtype):
    P = pack_m  # = b_blk * m  (lane width of the packed block)

    def kernel(x_ref, lcat_ref, *refs):
        o_ref = refs[-1]
        wb = refs[:-1]                       # per layer: w2, w1, w3, w4, bsum

        lcat = lcat_ref[...]                 # (P, 3P) block-diag [L^T | L2^T | L3^T]
        xt = x_ref[...].astype(compute_dtype)  # (F_in0, P) = packed x^T

        y = None
        for i in range(num_layers):
            w2 = wb[5 * i + 0][...]          # (F_out, F_in) compute_dtype
            w1 = wb[5 * i + 1][...]
            w3 = wb[5 * i + 2][...]
            w4 = wb[5 * i + 3][...]
            b = wb[5 * i + 4][...]           # (F_out, 1) f32, summed bias

            # Fused graph matmul: [ (Lx)^T | (L2x)^T | (L3x)^T ] in one MXU pass.
            # Output dtype = compute_dtype (MXU still accumulates f32 internally),
            # so no extra VPU cast is needed before the weight matmuls.
            gxt = jnp.dot(xt, lcat, preferred_element_type=compute_dtype)   # (F_in, 3P)

            # 4 accumulating weight matmuls (f32 accumulation); the lane slices of
            # gxt start at multiples of P (=128 when batch-packed), so no relayout
            # and no sublane concat.
            y = jnp.dot(w2, xt, preferred_element_type=jnp.float32)
            y = y + jnp.dot(w1, gxt[:, 0:P], preferred_element_type=jnp.float32)
            y = y + jnp.dot(w3, gxt[:, P:2 * P], preferred_element_type=jnp.float32)
            y = y + jnp.dot(w4, gxt[:, 2 * P:3 * P], preferred_element_type=jnp.float32)
            y = y + b                        # bias add in f32

            if i != num_layers - 1:
                y = jnp.maximum(y, 0.0)      # ReLU between layers (f32)
                xt = y.astype(compute_dtype)  # single cast per layer

        if output_fun == "sigmoid":
            y = jax.nn.sigmoid(y)
        elif output_fun == "tanh":
            y = jnp.tanh(y)
        # else: identity

        o_ref[...] = y.astype(o_ref.dtype)   # (F_out_last, P): lane-dense full store

    return kernel


# ----------------------------------------------------------------------------
# Wrapper: batch packing + parameter fusion in plain XLA + single pallas_call
# ----------------------------------------------------------------------------
def chebynet_forward(x, L, params, output_fun="sigmoid",
                     compute_dtype=jnp.float32):
    """x: (batch, window, m);  L: (m, m).  Returns (batch, m, 1) like the PyTorch model."""
    batch, window, m = x.shape
    num_layers = len(params)

    # --- choose how many batch elements share one grid step (fill 128 lanes) ---
    b_blk = max(1, 128 // m) if m < 128 else 1
    b_blk = min(b_blk, batch)
    nsteps = int(pl.cdiv(batch, b_blk))
    if nsteps == 1 and batch >= 2:
        # keep >=2 "parallel" grid steps so both v7x TensorCores get work
        nsteps = 2
        b_blk = int(pl.cdiv(batch, 2))
    padded = nsteps * b_blk
    P = b_blk * m                                   # packed lane width per block

    # --- Chebyshev polynomials of L + block-diagonal lane packing (tiny, plain XLA;
    #     cache at model-setup time if L is a fixed parameter) ---
    L2 = 2.0 * (L @ L) - jnp.eye(m, dtype=L.dtype)
    L3 = 2.0 * (L @ L2) - L
    eye_b = jnp.eye(b_blk, dtype=L.dtype)
    lcat_bd = jnp.concatenate(
        [jnp.kron(eye_b, L.T), jnp.kron(eye_b, L2.T), jnp.kron(eye_b, L3.T)],
        axis=1).astype(compute_dtype)               # (P, 3P)

    # --- x -> transposed, lane-packed layout: (nsteps, window, b_blk*m) ---
    if padded != batch:
        x = jnp.concatenate(
            [x, jnp.zeros((padded - batch, window, m), x.dtype)], axis=0)
    x_t = jnp.transpose(x.reshape(nsteps, b_blk, window, m),
                        (0, 2, 1, 3)).reshape(nsteps, window, P)

    # --- per-layer weights (PyTorch (F_out, F_in) layout) + summed biases ---
    args = [x_t, lcat_bd]
    in_specs = [
        pl.BlockSpec((None, window, P), lambda i: (i, 0, 0)),   # packed x^T slab
        pl.BlockSpec((P, 3 * P), lambda i: (0, 0)),             # block-diag graph mats
    ]
    for p in params:
        for name in ("w2", "w1", "w3", "w4"):       # order matches [x, Lx, L2x, L3x]
            w = p[name].astype(compute_dtype)
            args.append(w)
            in_specs.append(pl.BlockSpec(w.shape, lambda i: (0, 0)))
        bsum = (p["b1"] + p["b2"] + p["b3"] + p["b4"]).astype(jnp.float32).reshape(-1, 1)
        args.append(bsum)
        in_specs.append(pl.BlockSpec(bsum.shape, lambda i: (0, 0)))
    f_out_last = params[-1]["w1"].shape[0]

    kernel = _make_forward_kernel(num_layers, P, output_fun, compute_dtype)

    out = pl.pallas_call(
        kernel,
        out_shape=jax.ShapeDtypeStruct((nsteps, f_out_last, P), jnp.float32),
        grid=(nsteps,),
        in_specs=in_specs,
        out_specs=pl.BlockSpec((None, f_out_last, P), lambda i: (i, 0, 0)),
        compiler_params=pltpu.CompilerParams(
            dimension_semantics=("parallel",)),
    )(*args)

    # (nsteps, F_out, b_blk*m) -> (batch, m, F_out)  (PyTorch output layout)
    out = out.reshape(nsteps, f_out_last, b_blk, m)
    out = jnp.transpose(out, (0, 2, 3, 1)).reshape(padded, m, f_out_last)
    return out[:batch]


# ----------------------------------------------------------------------------
# Parameters (PyTorch nn.Linear layout + init: W (F_out, F_in), U(±1/sqrt(F_in)))
# ----------------------------------------------------------------------------
def init_params(key, window, hid, num_layers):
    dims = [window] + [hid] * (num_layers - 1) + [1]
    params = []
    for i in range(num_layers):
        f_in, f_out = dims[i], dims[i + 1]
        bound = 1.0 / np.sqrt(f_in)
        layer = {}
        for name in ("w1", "w2", "w3", "w4", "b1", "b2", "b3", "b4"):
            key, sub = jax.random.split(key)
            shape = (f_out, f_in) if name.startswith("w") else (f_out,)
            layer[name] = jax.random.uniform(sub, shape, jnp.float32, -bound, bound)
        params.append(layer)
    return params


# ----------------------------------------------------------------------------
# Pure-JAX reference (for correctness check)
# ----------------------------------------------------------------------------
def chebynet_reference(x, L, params, output_fun="sigmoid"):
    num_layers = len(params)
    x = jnp.transpose(x, (0, 2, 1))                  # (batch, m, window)
    m = L.shape[0]
    L2 = 2.0 * (L @ L) - jnp.eye(m, dtype=L.dtype)
    L3 = 2.0 * (L @ L2) - L
    # TODO(synk): nn.Dropout is identity in eval mode; training-mode dropout not emitted.
    for i, p in enumerate(params):
        Lx = jnp.einsum("ij,bjf->bif", L, x)
        L2x = jnp.einsum("ij,bjf->bif", L2, x)
        L3x = jnp.einsum("ij,bjf->bif", L3, x)
        y = (x @ p["w2"].T + p["b2"] + Lx @ p["w1"].T + p["b1"]
             + L3x @ p["w4"].T + p["b4"] + L2x @ p["w3"].T + p["b3"])
        if i != num_layers - 1:
            y = jnp.maximum(y, 0.0)
        x = y
    if output_fun == "sigmoid":
        x = jax.nn.sigmoid(x)
    elif output_fun == "tanh":
        x = jnp.tanh(x)
    return x


if __name__ == "__main__":
    # args: window=8, mask=False, num_layers=2, hidCNN=32, output_fun='sigmoid'
    # data: m=16 graph nodes.  batch=16 exercises the lane-packed path
    # (8 batch elements * 16 nodes = 128 lanes per block, 2 parallel grid steps).
    batch, window, m, hid, num_layers = 16, 8, 16, 32, 2

    key = jax.random.PRNGKey(0)
    k_x, k_L, k_p = jax.random.split(key, 3)

    x = jax.random.normal(k_x, (batch, window, m), jnp.float32)
    A = jax.random.normal(k_L, (m, m), jnp.float32) * 0.1
    L = 0.5 * (A + A.T)                              # symmetric Laplacian surrogate

    params = init_params(k_p, window, hid, num_layers)

    # f32 path (exact vs reference), fully lane-packed
    out = chebynet_forward(x, L, params, output_fun="sigmoid")
    out = jax.block_until_ready(out)
    ref = chebynet_reference(x, L, params, output_fun="sigmoid")
    np.testing.assert_allclose(np.asarray(out), np.asarray(ref),
                               rtol=1e-4, atol=1e-4)
    assert out.shape == (batch, m, 1)

    # odd small batch (exercises the padding / partial-pack path)
    out_small = chebynet_forward(x[:3], L, params, output_fun="sigmoid")
    out_small = jax.block_until_ready(out_small)
    ref_small = chebynet_reference(x[:3], L, params, output_fun="sigmoid")
    np.testing.assert_allclose(np.asarray(out_small), np.asarray(ref_small),
                               rtol=1e-4, atol=1e-4)
    assert out_small.shape == (3, m, 1)

    # bf16 matmul path (valid on v5e/v6e/v7x: MXU bf16 inputs, f32 accumulate;
    # bias/ReLU/sigmoid stay f32).  Loose tolerance: bf16 activations each layer.
    out_bf16 = chebynet_forward(x, L, params, output_fun="sigmoid",
                                compute_dtype=jnp.bfloat16)
    out_bf16 = jax.block_until_ready(out_bf16)
    np.testing.assert_allclose(np.asarray(out_bf16), np.asarray(ref),
                               rtol=5e-2, atol=5e-2)

    print("KERNEL_OK")
</pallas_src>

<mosaic_0001>
module attributes {stable_mosaic.version = 11 : i64} {
  func.func @kernel(%arg0: i32, %arg1: memref<1x8x128xf32, #tpu.memory_space<vmem>>, %arg2: memref<128x384xf32, #tpu.memory_space<vmem>>, %arg3: memref<32x8xf32, #tpu.memory_space<vmem>>, %arg4: memref<32x8xf32, #tpu.memory_space<vmem>>, %arg5: memref<32x8xf32, #tpu.memory_space<vmem>>, %arg6: memref<32x8xf32, #tpu.memory_space<vmem>>, %arg7: memref<32x1xf32, #tpu.memory_space<vmem>>, %arg8: memref<1x32xf32, #tpu.memory_space<vmem>>, %arg9: memref<1x32xf32, #tpu.memory_space<vmem>>, %arg10: memref<1x32xf32, #tpu.memory_space<vmem>>, %arg11: memref<1x32xf32, #tpu.memory_space<vmem>>, %arg12: memref<1x1xf32, #tpu.memory_space<vmem>>, %arg13: memref<1x1x128xf32, #tpu.memory_space<vmem>>) attributes {dimension_semantics = [#tpu.dimension_semantics<parallel>], iteration_bounds = array<i64: 2>, scalar_prefetch = 0 : i64, scratch_operands = 0 : i64, tpu.core_type = #tpu.core_type<tc>, window_params = [{transform_indices = @transform_0, window_bounds = array<i64: 1, 8, 128>}, {pipeline_mode = #tpu.pipeline_mode<synchronous>, transform_indices = @transform_1, window_bounds = array<i64: 128, 384>}, {pipeline_mode = #tpu.pipeline_mode<synchronous>, transform_indices = @transform_2, window_bounds = array<i64: 32, 8>}, {pipeline_mode = #tpu.pipeline_mode<synchronous>, transform_indices = @transform_3, window_bounds = array<i64: 32, 8>}, {pipeline_mode = #tpu.pipeline_mode<synchronous>, transform_indices = @transform_4, window_bounds = array<i64: 32, 8>}, {pipeline_mode = #tpu.pipeline_mode<synchronous>, transform_indices = @transform_5, window_bounds = array<i64: 32, 8>}, {pipeline_mode = #tpu.pipeline_mode<synchronous>, transform_indices = @transform_6, window_bounds = array<i64: 32, 1>}, {pipeline_mode = #tpu.pipeline_mode<synchronous>, transform_indices = @transform_7, window_bounds = array<i64: 1, 32>}, {pipeline_mode = #tpu.pipeline_mode<synchronous>, transform_indices = @transform_8, window_bounds = array<i64: 1, 32>}, {pipeline_mode = #tpu.pipeline_mode<synchronous>, transform_indices = @transform_9, window_bounds = array<i64: 1, 32>}, {pipeline_mode = #tpu.pipeline_mode<synchronous>, transform_indices = @transform_10, window_bounds = array<i64: 1, 32>}, {pipeline_mode = #tpu.pipeline_mode<synchronous>, transform_indices = @transform_11, window_bounds = array<i64: 1, 1>}, {transform_indices = @transform_12, window_bounds = array<i64: 1, 1, 128>}]} {
    %c0 = arith.constant 0 : index
    %c0_0 = arith.constant 0 : index
    %0 = vector.load %arg2[%c0, %c0_0] : memref<128x384xf32, #tpu.memory_space<vmem>>, vector<128x384xf32>
    %c0_1 = arith.constant 0 : index
    %c0_2 = arith.constant 0 : index
    %c0_3 = arith.constant 0 : index
    %1 = vector.load %arg1[%c0_1, %c0_2, %c0_3] : memref<1x8x128xf32, #tpu.memory_space<vmem>>, vector<1x8x128xf32>
    %2 = vector.shape_cast %1 : vector<1x8x128xf32> to vector<8x128xf32>
    %c0_4 = arith.constant 0 : index
    %c0_5 = arith.constant 0 : index
    %3 = vector.load %arg3[%c0_4, %c0_5] : memref<32x8xf32, #tpu.memory_space<vmem>>, vector<32x8xf32>
    %c0_6 = arith.constant 0 : index
    %c0_7 = arith.constant 0 : index
    %4 = vector.load %arg4[%c0_6, %c0_7] : memref<32x8xf32, #tpu.memory_space<vmem>>, vector<32x8xf32>
    %c0_8 = arith.constant 0 : index
    %c0_9 = arith.constant 0 : index
    %5 = vector.load %arg5[%c0_8, %c0_9] : memref<32x8xf32, #tpu.memory_space<vmem>>, vector<32x8xf32>
    %c0_10 = arith.constant 0 : index
    %c0_11 = arith.constant 0 : index
    %6 = vector.load %arg6[%c0_10, %c0_11] : memref<32x8xf32, #tpu.memory_space<vmem>>, vector<32x8xf32>
    %c0_12 = arith.constant 0 : index
    %c0_13 = arith.constant 0 : index
    %7 = vector.load %arg7[%c0_12, %c0_13] : memref<32x1xf32, #tpu.memory_space<vmem>>, vector<32x1xf32>
    %cst = arith.constant dense<0.000000e+00> : vector<8x384xf32>
    %8 = tpu.matmul %2, %0, %cst {dimension_numbers = #tpu.dot_dimension_numbers<[1], [0], [0], [1], [0, 0, 1, 1], [], []>} : vector<8x128xf32>, vector<128x384xf32>, vector<8x384xf32> -> vector<8x384xf32>
    %cst_14 = arith.constant dense<0.000000e+00> : vector<32x128xf32>
    %9 = tpu.matmul %3, %2, %cst_14 {dimension_numbers = #tpu.dot_dimension_numbers<[1], [0], [0], [1], [0, 0, 1, 1], [], []>} : vector<32x8xf32>, vector<8x128xf32>, vector<32x128xf32> -> vector<32x128xf32>
    %10 = vector.extract_strided_slice %8 {offsets = [0, 0], sizes = [8, 128], strides = [1, 1]} : vector<8x384xf32> to vector<8x128xf32>
    %cst_15 = arith.constant dense<0.000000e+00> : vector<32x128xf32>
    %11 = tpu.matmul %4, %10, %cst_15 {dimension_numbers = #tpu.dot_dimension_numbers<[1], [0], [0], [1], [0, 0, 1, 1], [], []>} : vector<32x8xf32>, vector<8x128xf32>, vector<32x128xf32> -> vector<32x128xf32>
    %12 = arith.addf %9, %11 : vector<32x128xf32>
    %13 = vector.extract_strided_slice %8 {offsets = [0, 128], sizes = [8, 128], strides = [1, 1]} : vector<8x384xf32> to vector<8x128xf32>
    %cst_16 = arith.constant dense<0.000000e+00> : vector<32x128xf32>
    %14 = tpu.matmul %5, %13, %cst_16 {dimension_numbers = #tpu.dot_dimension_numbers<[1], [0], [0], [1], [0, 0, 1, 1], [], []>} : vector<32x8xf32>, vector<8x128xf32>, vector<32x128xf32> -> vector<32x128xf32>
    %15 = arith.addf %12, %14 : vector<32x128xf32>
    %16 = vector.extract_strided_slice %8 {offsets = [0, 256], sizes = [8, 128], strides = [1, 1]} : vector<8x384xf32> to vector<8x128xf32>
    %cst_17 = arith.constant dense<0.000000e+00> : vector<32x128xf32>
    %17 = tpu.matmul %6, %16, %cst_17 {dimension_numbers = #tpu.dot_dimension_numbers<[1], [0], [0], [1], [0, 0, 1, 1], [], []>} : vector<32x8xf32>, vector<8x128xf32>, vector<32x128xf32> -> vector<32x128xf32>
    %18 = arith.addf %15, %17 : vector<32x128xf32>
    %19 = vector.broadcast %7 : vector<32x1xf32> to vector<32x128xf32>
    %20 = arith.addf %18, %19 : vector<32x128xf32>
    %cst_18 = arith.constant 0.000000e+00 : f32
    %21 = vector.broadcast %cst_18 : f32 to vector<32x128xf32>
    %22 = arith.maximumf %20, %21 : vector<32x128xf32>
    %c0_19 = arith.constant 0 : index
    %c0_20 = arith.constant 0 : index
    %23 = vector.load %arg8[%c0_19, %c0_20] : memref<1x32xf32, #tpu.memory_space<vmem>>, vector<1x32xf32>
    %c0_21 = arith.constant 0 : index
    %c0_22 = arith.constant 0 : index
    %24 = vector.load %arg9[%c0_21, %c0_22] : memref<1x32xf32, #tpu.memory_space<vmem>>, vector<1x32xf32>
    %c0_23 = arith.constant 0 : index
    %c0_24 = arith.constant 0 : index
    %25 = vector.load %arg10[%c0_23, %c0_24] : memref<1x32xf32, #tpu.memory_space<vmem>>, vector<1x32xf32>
    %c0_25 = arith.constant 0 : index
    %c0_26 = arith.constant 0 : index
    %26 = vector.load %arg11[%c0_25, %c0_26] : memref<1x32xf32, #tpu.memory_space<vmem>>, vector<1x32xf32>
    %c0_27 = arith.constant 0 : index
    %c0_28 = arith.constant 0 : index
    %27 = vector.load %arg12[%c0_27, %c0_28] : memref<1x1xf32, #tpu.memory_space<vmem>>, vector<1x1xf32>
    %cst_29 = arith.constant dense<0.000000e+00> : vector<32x384xf32>
    %28 = tpu.matmul %22, %0, %cst_29 {dimension_numbers = #tpu.dot_dimension_numbers<[1], [0], [0], [1], [0, 0, 1, 1], [], []>} : vector<32x128xf32>, vector<128x384xf32>, vector<32x384xf32> -> vector<32x384xf32>
    %cst_30 = arith.constant dense<0.000000e+00> : vector<1x128xf32>
    %29 = tpu.matmul %23, %22, %cst_30 {dimension_numbers = #tpu.dot_dimension_numbers<[1], [0], [0], [1], [0, 0, 1, 1], [], []>} : vector<1x32xf32>, vector<32x128xf32>, vector<1x128xf32> -> vector<1x128xf32>
    %30 = vector.extract_strided_slice %28 {offsets = [0, 0], sizes = [32, 128], strides = [1, 1]} : vector<32x384xf32> to vector<32x128xf32>
    %cst_31 = arith.constant dense<0.000000e+00> : vector<1x128xf32>
    %31 = tpu.matmul %24, %30, %cst_31 {dimension_numbers = #tpu.dot_dimension_numbers<[1], [0], [0], [1], [0, 0, 1, 1], [], []>} : vector<1x32xf32>, vector<32x128xf32>, vector<1x128xf32> -> vector<1x128xf32>
    %32 = arith.addf %29, %31 : vector<1x128xf32>
    %33 = vector.extract_strided_slice %28 {offsets = [0, 128], sizes = [32, 128], strides = [1, 1]} : vector<32x384xf32> to vector<32x128xf32>
    %cst_32 = arith.constant dense<0.000000e+00> : vector<1x128xf32>
    %34 = tpu.matmul %25, %33, %cst_32 {dimension_numbers = #tpu.dot_dimension_numbers<[1], [0], [0], [1], [0, 0, 1, 1], [], []>} : vector<1x32xf32>, vector<32x128xf32>, vector<1x128xf32> -> vector<1x128xf32>
    %35 = arith.addf %32, %34 : vector<1x128xf32>
    %36 = vector.extract_strided_slice %28 {offsets = [0, 256], sizes = [32, 128], strides = [1, 1]} : vector<32x384xf32> to vector<32x128xf32>
    %cst_33 = arith.constant dense<0.000000e+00> : vector<1x128xf32>
    %37 = tpu.matmul %26, %36, %cst_33 {dimension_numbers = #tpu.dot_dimension_numbers<[1], [0], [0], [1], [0, 0, 1, 1], [], []>} : vector<1x32xf32>, vector<32x128xf32>, vector<1x128xf32> -> vector<1x128xf32>
    %38 = arith.addf %35, %37 : vector<1x128xf32>
    %39 = vector.broadcast %27 : vector<1x1xf32> to vector<1x128xf32>
    %40 = arith.addf %38, %39 : vector<1x128xf32>
    %41 = arith.negf %40 : vector<1x128xf32>
    %42 = math.exp %41 : vector<1x128xf32>
    %cst_34 = arith.constant 1.000000e+00 : f32
    %43 = vector.broadcast %cst_34 : f32 to vector<1x128xf32>
    %44 = arith.addf %43, %42 : vector<1x128xf32>
    %45 = arith.divf %43, %44 : vector<1x128xf32>
    %c0_35 = arith.constant 0 : index
    %c0_36 = arith.constant 0 : index
    %c0_37 = arith.constant 0 : index
    %46 = vector.load %arg13[%c0_35, %c0_36, %c0_37] : memref<1x1x128xf32, #tpu.memory_space<vmem>>, vector<1x1x128xf32>
    %47 = vector.shape_cast %46 : vector<1x1x128xf32> to vector<1x128xf32>
    %48 = vector.shape_cast %45 : vector<1x128xf32> to vector<1x1x128xf32>
    tpu.vector_store %arg13[%c0_35, %c0_36, %c0_37], %48 {strides = array<i32>} : memref<1x1x128xf32, #tpu.memory_space<vmem>>, vector<1x1x128xf32>,
    return
  }
  func.func @transform_0(%arg0: i32) -> (i32, i32, i32) {
    %c0_i32 = arith.constant 0 : i32
    %c0_i32_0 = arith.constant 0 : i32
    %c0_i32_1 = arith.constant 0 : i32
    return %arg0, %c0_i32, %c0_i32_0 : i32, i32, i32
  }
  func.func @transform_1(%arg0: i32) -> (i32, i32) {
    %c0_i32 = arith.constant 0 : i32
    %c0_i32_0 = arith.constant 0 : i32
    %c0_i32_1 = arith.constant 0 : i32
    return %c0_i32, %c0_i32_0 : i32, i32
  }
  func.func @transform_2(%arg0: i32) -> (i32, i32) {
    %c0_i32 = arith.constant 0 : i32
    %c0_i32_0 = arith.constant 0 : i32
    %c0_i32_1 = arith.constant 0 : i32
    return %c0_i32, %c0_i32_0 : i32, i32
  }
  func.func @transform_3(%arg0: i32) -> (i32, i32) {
    %c0_i32 = arith.constant 0 : i32
    %c0_i32_0 = arith.constant 0 : i32
    %c0_i32_1 = arith.constant 0 : i32
    return %c0_i32, %c0_i32_0 : i32, i32
  }
  func.func @transform_4(%arg0: i32) -> (i32, i32) {
    %c0_i32 = arith.constant 0 : i32
    %c0_i32_0 = arith.constant 0 : i32
    %c0_i32_1 = arith.constant 0 : i32
    return %c0_i32, %c0_i32_0 : i32, i32
  }
  func.func @transform_5(%arg0: i32) -> (i32, i32) {
    %c0_i32 = arith.constant 0 : i32
    %c0_i32_0 = arith.constant 0 : i32
    %c0_i32_1 = arith.constant 0 : i32
    return %c0_i32, %c0_i32_0 : i32, i32
  }
  func.func @transform_6(%arg0: i32) -> (i32, i32) {
    %c0_i32 = arith.constant 0 : i32
    %c0_i32_0 = arith.constant 0 : i32
    %c0_i32_1 = arith.constant 0 : i32
    return %c0_i32, %c0_i32_0 : i32, i32
  }
  func.func @transform_7(%arg0: i32) -> (i32, i32) {
    %c0_i32 = arith.constant 0 : i32
    %c0_i32_0 = arith.constant 0 : i32
    %c0_i32_1 = arith.constant 0 : i32
    return %c0_i32, %c0_i32_0 : i32, i32
  }
  func.func @transform_8(%arg0: i32) -> (i32, i32) {
    %c0_i32 = arith.constant 0 : i32
    %c0_i32_0 = arith.constant 0 : i32
    %c0_i32_1 = arith.constant 0 : i32
    return %c0_i32, %c0_i32_0 : i32, i32
  }
  func.func @transform_9(%arg0: i32) -> (i32, i32) {
    %c0_i32 = arith.constant 0 : i32
    %c0_i32_0 = arith.constant 0 : i32
    %c0_i32_1 = arith.constant 0 : i32
    return %c0_i32, %c0_i32_0 : i32, i32
  }
  func.func @transform_10(%arg0: i32) -> (i32, i32) {
    %c0_i32 = arith.constant 0 : i32
    %c0_i32_0 = arith.constant 0 : i32
    %c0_i32_1 = arith.constant 0 : i32
    return %c0_i32, %c0_i32_0 : i32, i32
  }
  func.func @transform_11(%arg0: i32) -> (i32, i32) {
    %c0_i32 = arith.constant 0 : i32
    %c0_i32_0 = arith.constant 0 : i32
    %c0_i32_1 = arith.constant 0 : i32
    return %c0_i32, %c0_i32_0 : i32, i32
  }
  func.func @transform_12(%arg0: i32) -> (i32, i32, i32) {
    %c0_i32 = arith.constant 0 : i32
    %c0_i32_0 = arith.constant 0 : i32
    %c0_i32_1 = arith.constant 0 : i32
    return %arg0, %c0_i32, %c0_i32_0 : i32, i32, i32
  }
}

</mosaic_0001>

<llo_original>
// kernel: tpu_custom_call.1
$region0: #{tpu_custom_call.1}
  #allocation0 [shape = 'u32[]', space=smem, size = 0x4, offset = 0x4, fixed_abs, tag = 'smem constant byte address 0x4 - core index']
  #allocation1 [shape = 'u32[72,128]{1,0:T(1,128)}', space=vmem, size = 0x9000, scoped, tag = 'internal scratch']
  #allocation2 [shape = 'f32[1,1]{1,0:T(1,128)S(1)}', space=vmem, size = 0x200, scoped, tag = 'scoped memory for tpu_custom_call.1']
  %s0 = inlined_call_operand.vmem [shape: f32[2,8,128], index: 0, kind: input, shape index: {}]
  %s1 = inlined_call_operand.hbm [shape: f32[128,384], index: 1, kind: input, shape index: {}]
  %s2 = inlined_call_operand.vmem [shape: f32[32,8], index: 2, kind: input, shape index: {}]
  %s3 = inlined_call_operand.vmem [shape: f32[32,8], index: 3, kind: input, shape index: {}]
  %s4 = inlined_call_operand.vmem [shape: f32[32,8], index: 4, kind: input, shape index: {}]
  %s5 = inlined_call_operand.vmem [shape: f32[32,8], index: 5, kind: input, shape index: {}]
  %s6 = inlined_call_operand.vmem [shape: f32[32,1], index: 6, kind: input, shape index: {}]
  %s7 = inlined_call_operand.vmem [shape: f32[1,32], index: 7, kind: input, shape index: {}]
  %s8 = inlined_call_operand.vmem [shape: f32[1,32], index: 8, kind: input, shape index: {}]
  %s9 = inlined_call_operand.vmem [shape: f32[1,32], index: 9, kind: input, shape index: {}]
  %s10 = inlined_call_operand.vmem [shape: f32[1,32], index: 10, kind: input, shape index: {}]
  %s11 = inlined_call_operand.<no memory space> [shape: f32[1,1], index: 11, kind: input, shape index: {}]
  %s12 = inlined_call_operand.hbm [shape: f32[2,1,128], index: 12, kind: output, shape index: {}]
  %s13 = sld [smem:[#allocation0]]
  $region85: #{tpu_custom_call.1} parent=0
    _
  %s15 = ssub.s32 1, %s13
  %s16 = scalar_select 0, %s15, %s13
  %v17 = vstv %s11
  %18 = vst [vmem:[#allocation2] sm:$0x1] %v17
  $region1: #{tpu_custom_call.1} parent=0
    #allocation3 [shape = 'u8[196608]{0}', space=vmem, size = 0x30000, scoped, tag = 'input window, operand 1, single buffered']
    #allocation4 [shape = 's32[2]{0}', space=sflag, size = 0x8, scoped, tag = 'scoped memory for tpu_custom_call.1']
    #allocation5 [shape = 's32[2]{0}', space=sflag, size = 0x8, scoped, tag = 'scoped memory for tpu_custom_call.1']
    #allocation6 [shape = 'u8[1024]{0}', space=vmem, size = 0x400, scoped, tag = 'output window, operand 0']
    %19 = vsyncpa [#allocation4], 0
    %20 = vsyncpa [#allocation5], 0
    %s21 = scalar_lea.sflag [#allocation5], 1
    %22 = vsyncpa %s21, 0
    loop: start=0, step=1, limit=4
    $region2: #{tpu_custom_call.1} parent=1 // loop_pre_header
      _
    $region3: #{tpu_custom_call.1} parent=1 // loop_header
      %s24 = sphi 0, %s28
      %p25 = scmp.ge.s32.totalorder %s24, 4
      %s34 = sphi 0, %s36
      %s37 = sphi 0, %s34
      %s38 = sphi 0, %s37
      %s54 = sphi 0, %s38
      %s58 = sphi 0, %s58
      %s60 = sphi 0, %s58
      %s61 = sphi 0, %s60
      %s75 = sphi 0, %s61
      %s79 = sphi 0, %s79
      %s81 = sphi 0, %s79
      %s82 = sphi 0, %s81
      %s96 = sphi 0, %s82
      %s100 = sphi 0, %s100
      %s102 = sphi 0, %s100
      %s103 = sphi 0, %s102
      %s117 = sphi 0, %s103
      %s121 = sphi 0, %s121
      %s123 = sphi 0, %s121
      %s124 = sphi 0, %s123
      %s138 = sphi 0, %s124
      %s142 = sphi 0, %s142
      %s144 = sphi 0, %s142
      %s145 = sphi 0, %s144
      %s159 = sphi 0, %s145
      %s163 = sphi 0, %s163
      %s165 = sphi 0, %s163
      %s166 = sphi 0, %s165
      %s180 = sphi 0, %s166
      %s184 = sphi 0, %s184
      %s186 = sphi 0, %s184
      %s187 = sphi 0, %s186
      %s201 = sphi 0, %s187
      %s205 = sphi 0, %s205
      %s207 = sphi 0, %s205
      %s208 = sphi 0, %s207
      %s222 = sphi 0, %s208
      %s226 = sphi 0, %s226
      %s228 = sphi 0, %s226
      %s229 = sphi 0, %s228
      %s243 = sphi 0, %s229
      %s247 = sphi 0, %s247
      %s249 = sphi 0, %s247
      %s250 = sphi 0, %s249
      %s264 = sphi 0, %s250
      %s268 = sphi 0, %s268
      %s270 = sphi 0, %s268
      %s271 = sphi 0, %s270
      %s285 = sphi 0, %s271
      %s291 = sphi 0, %s293
      %s294 = sphi 0, %s291
      %s295 = sphi 0, %s294
      %s311 = sphi 0, %s295
    $region4: #{tpu_custom_call.1} parent=1 // loop_header_branch
      %27 = sbr.rel (%p25) target = $region8
    $region5: #{tpu_custom_call.1} parent=1 // loop_body
      %s29 = ssub.s32 %s24, 1
      %s30 = ssub.s32 %s24, 2
      %s31 = sadd.s32 %s24, 1
      %s32 = ssub.s32 %s24, %s31
      %p33 = scmp.eq.s32.totalorder %s32, 0
      %s35 = sadd.s32 %s34, 1
      %s36 = scalar_select %p33, %s34, %s35
      %p39 = pneg %p33
      %p40 = scmp.eq.s32.totalorder %s24, 1
      %p41 = por %p39, %p40
      %p42 = scmp.ne.s32.totalorder %s34, %s37
      %p43 = scmp.eq.s32.totalorder %s24, 0
      %p44 = por %p42, %p43
      %p45 = scmp.ne.s32.totalorder %s34, %s37
      %p46 = scmp.eq.s32.totalorder %s29, 1
      %p47 = por %p45, %p46
      %p48 = scmp.ne.s32.totalorder %s37, %s38
      %p49 = scmp.eq.s32.totalorder %s29, 0
      %p50 = por %p48, %p49
      %p51 = scmp.ne.s32.totalorder %s37, %s38
      %p52 = scmp.eq.s32.totalorder %s30, 1
      %p53 = por %p51, %p52
      %p55 = scmp.ne.s32.totalorder %s38, %s54
      %p56 = scmp.eq.s32.totalorder %s30, 0
      %p57 = por %p55, %p56
      %s59 = sadd.s32 %s58, 1
      %p62 = scmp.eq.s32.totalorder %s24, 1
      %p63 = scmp.ne.s32.totalorder %s58, %s60
      %p64 = scmp.eq.s32.totalorder %s24, 0
      %p65 = por %p63, %p64
      %p66 = scmp.ne.s32.totalorder %s58, %s60
      %p67 = scmp.eq.s32.totalorder %s29, 1
      %p68 = por %p66, %p67
      %p69 = scmp.ne.s32.totalorder %s60, %s61
      %p70 = scmp.eq.s32.totalorder %s29, 0
      %p71 = por %p69, %p70
      %p72 = scmp.ne.s32.totalorder %s60, %s61
      %p73 = scmp.eq.s32.totalorder %s30, 1
      %p74 = por %p72, %p73
      %p76 = scmp.ne.s32.totalorder %s61, %s75
      %p77 = scmp.eq.s32.totalorder %s30, 0
      %p78 = por %p76, %p77
      %s80 = sadd.s32 %s79, 1
      %p83 = scmp.eq.s32.totalorder %s24, 1
      %p84 = scmp.ne.s32.totalorder %s79, %s81
      %p85 = scmp.eq.s32.totalorder %s24, 0
      %p86 = por %p84, %p85
      %p87 = scmp.ne.s32.totalorder %s79, %s81
      %p88 = scmp.eq.s32.totalorder %s29, 1
      %p89 = por %p87, %p88
      %p90 = scmp.ne.s32.totalorder %s81, %s82
      %p91 = scmp.eq.s32.totalorder %s29, 0
      %p92 = por %p90, %p91
      %p93 = scmp.ne.s32.totalorder %s81, %s82
      %p94 = scmp.eq.s32.totalorder %s30, 1
      %p95 = por %p93, %p94
      %p97 = scmp.ne.s32.totalorder %s82, %s96
      %p98 = scmp.eq.s32.totalorder %s30, 0
      %p99 = por %p97, %p98
      %s101 = sadd.s32 %s100, 1
      %p104 = scmp.eq.s32.totalorder %s24, 1
      %p105 = scmp.ne.s32.totalorder %s100, %s102
      %p106 = scmp.eq.s32.totalorder %s24, 0
      %p107 = por %p105, %p106
      %p108 = scmp.ne.s32.totalorder %s100, %s102
      %p109 = scmp.eq.s32.totalorder %s29, 1
      %p110 = por %p108, %p109
      %p111 = scmp.ne.s32.totalorder %s102, %s103
      %p112 = scmp.eq.s32.totalorder %s29, 0
      %p113 = por %p111, %p112
      %p114 = scmp.ne.s32.totalorder %s102, %s103
      %p115 = scmp.eq.s32.totalorder %s30, 1
      %p116 = por %p114, %p115
      %p118 = scmp.ne.s32.totalorder %s103, %s117
      %p119 = scmp.eq.s32.totalorder %s30, 0
      %p120 = por %p118, %p119
      %s122 = sadd.s32 %s121, 1
      %p125 = scmp.eq.s32.totalorder %s24, 1
      %p126 = scmp.ne.s32.totalorder %s121, %s123
      %p127 = scmp.eq.s32.totalorder %s24, 0
      %p128 = por %p126, %p127
      %p129 = scmp.ne.s32.totalorder %s121, %s123
      %p130 = scmp.eq.s32.totalorder %s29, 1
      %p131 = por %p129, %p130
      %p132 = scmp.ne.s32.totalorder %s123, %s124
      %p133 = scmp.eq.s32.totalorder %s29, 0
      %p134 = por %p132, %p133
      %p135 = scmp.ne.s32.totalorder %s123, %s124
      %p136 = scmp.eq.s32.totalorder %s30, 1
      %p137 = por %p135, %p136
      %p139 = scmp.ne.s32.totalorder %s124, %s138
      %p140 = scmp.eq.s32.totalorder %s30, 0
      %p141 = por %p139, %p140
      %s143 = sadd.s32 %s142, 1
      %p146 = scmp.eq.s32.totalorder %s24, 1
      %p147 = scmp.ne.s32.totalorder %s142, %s144
      %p148 = scmp.eq.s32.totalorder %s24, 0
      %p149 = por %p147, %p148
      %p150 = scmp.ne.s32.totalorder %s142, %s144
      %p151 = scmp.eq.s32.totalorder %s29, 1
      %p152 = por %p150, %p151
      %p153 = scmp.ne.s32.totalorder %s144, %s145
      %p154 = scmp.eq.s32.totalorder %s29, 0
      %p155 = por %p153, %p154
      %p156 = scmp.ne.s32.totalorder %s144, %s145
      %p157 = scmp.eq.s32.totalorder %s30, 1
      %p158 = por %p156, %p157
      %p160 = scmp.ne.s32.totalorder %s145, %s159
      %p161 = scmp.eq.s32.totalorder %s30, 0
      %p162 = por %p160, %p161
      %s164 = sadd.s32 %s163, 1
      %p167 = scmp.eq.s32.totalorder %s24, 1
      %p168 = scmp.ne.s32.totalorder %s163, %s165
      %p169 = scmp.eq.s32.totalorder %s24, 0
      %p170 = por %p168, %p169
      %p171 = scmp.ne.s32.totalorder %s163, %s165
      %p172 = scmp.eq.s32.totalorder %s29, 1
      %p173 = por %p171, %p172
      %p174 = scmp.ne.s32.totalorder %s165, %s166
      %p175 = scmp.eq.s32.totalorder %s29, 0
      %p176 = por %p174, %p175
      %p177 = scmp.ne.s32.totalorder %s165, %s166
      %p178 = scmp.eq.s32.totalorder %s30, 1
      %p179 = por %p177, %p178
      %p181 = scmp.ne.s32.totalorder %s166, %s180
      %p182 = scmp.eq.s32.totalorder %s30, 0
      %p183 = por %p181, %p182
      %s185 = sadd.s32 %s184, 1
      %p188 = scmp.eq.s32.totalorder %s24, 1
      %p189 = scmp.ne.s32.totalorder %s184, %s186
      %p190 = scmp.eq.s32.totalorder %s24, 0
      %p191 = por %p189, %p190
      %p192 = scmp.ne.s32.totalorder %s184, %s186
      %p193 = scmp.eq.s32.totalorder %s29, 1
      %p194 = por %p192, %p193
      %p195 = scmp.ne.s32.totalorder %s186, %s187
      %p196 = scmp.eq.s32.totalorder %s29, 0
      %p197 = por %p195, %p196
      %p198 = scmp.ne.s32.totalorder %s186, %s187
      %p199 = scmp.eq.s32.totalorder %s30, 1
      %p200 = por %p198, %p199
      %p202 = scmp.ne.s32.totalorder %s187, %s201
      %p203 = scmp.eq.s32.totalorder %s30, 0
      %p204 = por %p202, %p203
      %s206 = sadd.s32 %s205, 1
      %p209 = scmp.eq.s32.totalorder %s24, 1
      %p210 = scmp.ne.s32.totalorder %s205, %s207
      %p211 = scmp.eq.s32.totalorder %s24, 0
      %p212 = por %p210, %p211
      %p213 = scmp.ne.s32.totalorder %s205, %s207
      %p214 = scmp.eq.s32.totalorder %s29, 1
      %p215 = por %p213, %p214
      %p216 = scmp.ne.s32.totalorder %s207, %s208
      %p217 = scmp.eq.s32.totalorder %s29, 0
      %p218 = por %p216, %p217
      %p219 = scmp.ne.s32.totalorder %s207, %s208
      %p220 = scmp.eq.s32.totalorder %s30, 1
      %p221 = por %p219, %p220
      %p223 = scmp.ne.s32.totalorder %s208, %s222
      %p224 = scmp.eq.s32.totalorder %s30, 0
      %p225 = por %p223, %p224
      %s227 = sadd.s32 %s226, 1
      %p230 = scmp.eq.s32.totalorder %s24, 1
      %p231 = scmp.ne.s32.totalorder %s226, %s228
      %p232 = scmp.eq.s32.totalorder %s24, 0
      %p233 = por %p231, %p232
      %p234 = scmp.ne.s32.totalorder %s226, %s228
      %p235 = scmp.eq.s32.totalorder %s29, 1
      %p236 = por %p234, %p235
      %p237 = scmp.ne.s32.totalorder %s228, %s229
      %p238 = scmp.eq.s32.totalorder %s29, 0
      %p239 = por %p237, %p238
      %p240 = scmp.ne.s32.totalorder %s228, %s229
      %p241 = scmp.eq.s32.totalorder %s30, 1
      %p242 = por %p240, %p241
      %p244 = scmp.ne.s32.totalorder %s229, %s243
      %p245 = scmp.eq.s32.totalorder %s30, 0
      %p246 = por %p244, %p245
      %s248 = sadd.s32 %s247, 1
      %p251 = scmp.eq.s32.totalorder %s24, 1
      %p252 = scmp.ne.s32.totalorder %s247, %s249
      %p253 = scmp.eq.s32.totalorder %s24, 0
      %p254 = por %p252, %p253
      %p255 = scmp.ne.s32.totalorder %s247, %s249
      %p256 = scmp.eq.s32.totalorder %s29, 1
      %p257 = por %p255, %p256
      %p258 = scmp.ne.s32.totalorder %s249, %s250
      %p259 = scmp.eq.s32.totalorder %s29, 0
      %p260 = por %p258, %p259
      %p261 = scmp.ne.s32.totalorder %s249, %s250
      %p262 = scmp.eq.s32.totalorder %s30, 1
      %p263 = por %p261, %p262
      %p265 = scmp.ne.s32.totalorder %s250, %s264
      %p266 = scmp.eq.s32.totalorder %s30, 0
      %p267 = por %p265, %p266
      %s269 = sadd.s32 %s268, 1
      %p272 = scmp.eq.s32.totalorder %s24, 1
      %p273 = scmp.ne.s32.totalorder %s268, %s270
      %p274 = scmp.eq.s32.totalorder %s24, 0
      %p275 = por %p273, %p274
      %p276 = scmp.ne.s32.totalorder %s268, %s270
      %p277 = scmp.eq.s32.totalorder %s29, 1
      %p278 = por %p276, %p277
      %p279 = scmp.ne.s32.totalorder %s270, %s271
      %p280 = scmp.eq.s32.totalorder %s29, 0
      %p281 = por %p279, %p280
      %p282 = scmp.ne.s32.totalorder %s270, %s271
      %p283 = scmp.eq.s32.totalorder %s30, 1
      %p284 = por %p282, %p283
      %p286 = scmp.ne.s32.totalorder %s271, %s285
      %p287 = scmp.eq.s32.totalorder %s30, 0
      %p288 = por %p286, %p287
      %s289 = ssub.s32 %s24, %s31
      %p290 = scmp.eq.s32.totalorder %s289, 0
      %s292 = sadd.s32 %s291, 1
      %s293 = scalar_select %p290, %s291, %s292
      %p296 = pneg %p290
      %p297 = scmp.eq.s32.totalorder %s24, 1
      %p298 = por %p296, %p297
      %p299 = scmp.ne.s32.totalorder %s291, %s294
      %p300 = scmp.eq.s32.totalorder %s24, 0
      %p301 = por %p299, %p300
      %p302 = scmp.ne.s32.totalorder %s291, %s294
      %p303 = scmp.eq.s32.totalorder %s29, 1
      %p304 = por %p302, %p303
      %p305 = scmp.ne.s32.totalorder %s294, %s295
      %p306 = scmp.eq.s32.totalorder %s29, 0
      %p307 = por %p305, %p306
      %p308 = scmp.ne.s32.totalorder %s294, %s295
      %p309 = scmp.eq.s32.totalorder %s30, 1
      %p310 = por %p308, %p309
      %p312 = scmp.ne.s32.totalorder %s295, %s311
      %p313 = scmp.eq.s32.totalorder %s30, 0
      %p314 = por %p312, %p313
      %p315 = scmp.le.s32.totalorder 1, %s24
      %p316 = scmp.lt.s32.totalorder %s24, 3
      %p317 = pnand %p315, %p316
      %p318 = pneg %p317
      // Predicated region
      $region9: #{tpu_custom_call.1} parent=5 // pred_check
        _
      $region10: #{tpu_custom_call.1} parent=5 // pred_check_branch
        %320 = sbr.rel (%p317) target = $region12
      $region11: #{tpu_custom_call.1} parent=5 // pred_region
        %s321 = ssub.s32 %s24, 1
        // Predicated region
        $region13: #{tpu_custom_call.1} parent=11 // pred_check
          %p322 = pneg %p71
        $region14: #{tpu_custom_call.1} parent=11 // pred_check_branch
          %324 = sbr.rel (%p322) target = $region16
        $region15: #{tpu_custom_call.1} parent=11 // pred_region
          %326 = vsyncadd [#allocation4], 0
          %s327 = sshll.u32 %s1, 4
          %s328 = int_to_ptr.hbm [resolvable:$true] %s327
          %s329 = sshll.u32 [#allocation3], 4
          %s330 = int_to_ptr.vmem [resolvable:$true] %s329
          %335 = dma.hbm_to_vmem [thread:$0]  %s328, 6144, %s330, [#allocation4], 384, 384, 24
        $region16: #{tpu_custom_call.1} parent=11 // pred_fallthru
          _
        // Predicated region
        $region17: #{tpu_custom_call.1} parent=11 // pred_check
          %p336 = pneg %p92
        $region18: #{tpu_custom_call.1} parent=11 // pred_check_branch
          %338 = sbr.rel (%p336) target = $region20
        $region19: #{tpu_custom_call.1} parent=11 // pred_region
          _
        $region20: #{tpu_custom_call.1} parent=11 // pred_fallthru
          _
        // Predicated region
        $region21: #{tpu_custom_call.1} parent=11 // pred_check
          %p339 = pneg %p113
        $region22: #{tpu_custom_call.1} parent=11 // pred_check_branch
          %341 = sbr.rel (%p339) target = $region24
        $region23: #{tpu_custom_call.1} parent=11 // pred_region
          _
        $region24: #{tpu_custom_call.1} parent=11 // pred_fallthru
          _
        // Predicated region
        $region25: #{tpu_custom_call.1} parent=11 // pred_check
          %p342 = pneg %p134
        $region26: #{tpu_custom_call.1} parent=11 // pred_check_branch
          %344 = sbr.rel (%p342) target = $region28
        $region27: #{tpu_custom_call.1} parent=11 // pred_region
          _
        $region28: #{tpu_custom_call.1} parent=11 // pred_fallthru
          _
        // Predicated region
        $region29: #{tpu_custom_call.1} parent=11 // pred_check
          %p345 = pneg %p155
        $region30: #{tpu_custom_call.1} parent=11 // pred_check_branch
          %347 = sbr.rel (%p345) target = $region32
        $region31: #{tpu_custom_call.1} parent=11 // pred_region
          _
        $region32: #{tpu_custom_call.1} parent=11 // pred_fallthru
          _
        // Predicated region
        $region33: #{tpu_custom_call.1} parent=11 // pred_check
          %p348 = pneg %p176
        $region34: #{tpu_custom_call.1} parent=11 // pred_check_branch
          %350 = sbr.rel (%p348) target = $region36
        $region35: #{tpu_custom_call.1} parent=11 // pred_region
          _
        $region36: #{tpu_custom_call.1} parent=11 // pred_fallthru
          _
        // Predicated region
        $region37: #{tpu_custom_call.1} parent=11 // pred_check
          %p351 = pneg %p197
        $region38: #{tpu_custom_call.1} parent=11 // pred_check_branch
          %353 = sbr.rel (%p351) target = $region40
        $region39: #{tpu_custom_call.1} parent=11 // pred_region
          _
        $region40: #{tpu_custom_call.1} parent=11 // pred_fallthru
          _
        // Predicated region
        $region41: #{tpu_custom_call.1} parent=11 // pred_check
          %p354 = pneg %p218
        $region42: #{tpu_custom_call.1} parent=11 // pred_check_branch
          %356 = sbr.rel (%p354) target = $region44
        $region43: #{tpu_custom_call.1} parent=11 // pred_region
          _
        $region44: #{tpu_custom_call.1} parent=11 // pred_fallthru
          _
        // Predicated region
        $region45: #{tpu_custom_call.1} parent=11 // pred_check
          %p357 = pneg %p239
        $region46: #{tpu_custom_call.1} parent=11 // pred_check_branch
          %359 = sbr.rel (%p357) target = $region48
        $region47: #{tpu_custom_call.1} parent=11 // pred_region
          _
        $region48: #{tpu_custom_call.1} parent=11 // pred_fallthru
          _
        // Predicated region
        $region49: #{tpu_custom_call.1} parent=11 // pred_check
          %p360 = pneg %p260
        $region50: #{tpu_custom_call.1} parent=11 // pred_check_branch
          %362 = sbr.rel (%p360) target = $region52
        $region51: #{tpu_custom_call.1} parent=11 // pred_region
          _
        $region52: #{tpu_custom_call.1} parent=11 // pred_fallthru
          _
        // Predicated region
        $region53: #{tpu_custom_call.1} parent=11 // pred_check
          %p363 = pneg %p281
        $region54: #{tpu_custom_call.1} parent=11 // pred_check_branch
          %365 = sbr.rel (%p363) target = $region56
        $region55: #{tpu_custom_call.1} parent=11 // pred_region
          _
        $region56: #{tpu_custom_call.1} parent=11 // pred_fallthru
          _
      $region12: #{tpu_custom_call.1} parent=5 // pred_fallthru
        _
      %p366 = scmp.lt.s32.totalorder %s24, 2
      // Predicated region
      $region57: #{tpu_custom_call.1} parent=5 // pred_check
        %p367 = pneg %p366
      $region58: #{tpu_custom_call.1} parent=5 // pred_check_branch
        %369 = sbr.rel (%p367) target = $region60
      $region59: #{tpu_custom_call.1} parent=5 // pred_region
        // Predicated region
        $region61: #{tpu_custom_call.1} parent=59 // pred_check
          %p370 = pneg %p44
        $region62: #{tpu_custom_call.1} parent=59 // pred_check_branch
          %372 = sbr.rel (%p370) target = $region64
        $region63: #{tpu_custom_call.1} parent=59 // pred_region
          %p373 = scmp.lt.s32.totalorder %s24, 1
          %s374 = scalar_select %p373, %s24, 1
          %s375 = smul.addr %s374, 8
          %s376 = scalar_lea.vmem %s0, %s375
        $region64: #{tpu_custom_call.1} parent=59 // pred_fallthru
          _
      $region60: #{tpu_custom_call.1} parent=5 // pred_fallthru
        _
      %p377 = scmp.le.s32.totalorder 1, %s24
      %p378 = scmp.lt.s32.totalorder %s24, 3
      %p379 = pnand %p377, %p378
      %p380 = pneg %p379
      // Predicated region
      $region65: #{tpu_custom_call.1} parent=5 // pred_check
        _
      $region66: #{tpu_custom_call.1} parent=5 // pred_check_branch
        %382 = sbr.rel (%p379) target = $region68
      $region67: #{tpu_custom_call.1} parent=5 // pred_region
        %s383 = ssub.s32 %s24, 1
        // Predicated region
        $region69: #{tpu_custom_call.1} parent=67 // pred_check
          %p384 = pneg %p71
        $region70: #{tpu_custom_call.1} parent=67 // pred_check_branch
          %386 = sbr.rel (%p384) target = $region72
        $region71: #{tpu_custom_call.1} parent=67 // pred_region
          %388 = dma.done [#allocation4], 6144
        $region72: #{tpu_custom_call.1} parent=67 // pred_fallthru
          _
        %p389 = scmp.lt.s32.totalorder %s29, 1
        %s390 = scalar_select %p389, %s29, 1
        %s391 = smul.addr %s390, 8
        %s392 = scalar_lea.vmem %s0, %s391
        %p393 = pneg %p50
        %p394 = pneg %p47
        %p395 = pneg %p71
        %p396 = pneg %p68
        %p397 = pneg %p92
        %p398 = pneg %p89
        %p399 = pneg %p113
        %p400 = pneg %p110
        %p401 = pneg %p134
        %p402 = pneg %p131
        %p403 = pneg %p155
        %p404 = pneg %p152
        %p405 = pneg %p176
        %p406 = pneg %p173
        %p407 = pneg %p197
        %p408 = pneg %p194
        %p409 = pneg %p218
        %p410 = pneg %p215
        %p411 = pneg %p239
        %p412 = pneg %p236
        %p413 = pneg %p260
        %p414 = pneg %p257
        %p415 = pneg %p281
        %p416 = pneg %p278
        %p417 = pneg %p307
        %p418 = pneg %p304
        %s419 = sand.u32 %s294, 1
        %s420 = scalar_lea.sflag [#allocation5], %s419
        %s421 = sand.u32 %s294, 1
        %s422 = scalar_lea.vmem [#allocation6], %s421
        %p423 = scmp.lt.s32.totalorder %s29, 1
        %s424 = scalar_select %p423, %s29, 1
        %s425 = smul.addr %s424, 8
        %s426 = scalar_lea.vmem %s0, %s425
        %v427 = vld [vmem:[#allocation3] sm:$0xff]
        %v428 = vld [vmem:[#allocation3 + $0x8] sm:$0xff]
        %v429 = vld [vmem:[#allocation3 + $0x10] sm:$0xff]
        %v430 = vld [vmem:[#allocation3 + $0x18] sm:$0xff]
        %v431 = vld [vmem:[#allocation3 + $0x20] sm:$0xff]
        %v432 = vld [vmem:[#allocation3 + $0x28] sm:$0xff]
        %v433 = vld [vmem:[#allocation3 + $0x30] sm:$0xff]
        %v434 = vld [vmem:[#allocation3 + $0x38] sm:$0xff]
        %v435 = vld [vmem:[#allocation3 + $0x40] sm:$0xff]
        %v436 = vld [vmem:[#allocation3 + $0x48] sm:$0xff]
        %v437 = vld [vmem:[#allocation3 + $0x50] sm:$0xff]
        %v438 = vld [vmem:[#allocation3 + $0x58] sm:$0xff]
        %v439 = vld [vmem:[#allocation3 + $0x60] sm:$0xff]
        %v440 = vld [vmem:[#allocation3 + $0x68] sm:$0xff]
        %v441 = vld [vmem:[#allocation3 + $0x70] sm:$0xff]
        %v442 = vld [vmem:[#allocation3 + $0x78] sm:$0xff]
        %v443 = vld [vmem:[#allocation3 + $0x80] sm:$0xff]
        %v444 = vld [vmem:[#allocation3 + $0x88] sm:$0xff]
        %v445 = vld [vmem:[#allocation3 + $0x90] sm:$0xff]
        %v446 = vld [vmem:[#allocation3 + $0x98] sm:$0xff]
        %v447 = vld [vmem:[#allocation3 + $0xa0] sm:$0xff]
        %v448 = vld [vmem:[#allocation3 + $0xa8] sm:$0xff]
        %v449 = vld [vmem:[#allocation3 + $0xb0] sm:$0xff]
        %v450 = vld [vmem:[#allocation3 + $0xb8] sm:$0xff]
        %v451 = vld [vmem:[#allocation3 + $0xc0] sm:$0xff]
        %v452 = vld [vmem:[#allocation3 + $0xc8] sm:$0xff]
        %v453 = vld [vmem:[#allocation3 + $0xd0] sm:$0xff]
        %v454 = vld [vmem:[#allocation3 + $0xd8] sm:$0xff]
        %v455 = vld [vmem:[#allocation3 + $0xe0] sm:$0xff]
        %v456 = vld [vmem:[#allocation3 + $0xe8] sm:$0xff]
        %v457 = vld [vmem:[#allocation3 + $0xf0] sm:$0xff]
        %v458 = vld [vmem:[#allocation3 + $0xf8] sm:$0xff]
        %v459 = vld [vmem:[#allocation3 + $0x100] sm:$0xff]
        %v460 = vld [vmem:[#allocation3 + $0x108] sm:$0xff]
        %v461 = vld [vmem:[#allocation3 + $0x110] sm:$0xff]
        %v462 = vld [vmem:[#allocation3 + $0x118] sm:$0xff]
        %v463 = vld [vmem:[#allocation3 + $0x120] sm:$0xff]
        %v464 = vld [vmem:[#allocation3 + $0x128] sm:$0xff]
        %v465 = vld [vmem:[#allocation3 + $0x130] sm:$0xff]
        %v466 = vld [vmem:[#allocation3 + $0x138] sm:$0xff]
        %v467 = vld [vmem:[#allocation3 + $0x140] sm:$0xff]
        %v468 = vld [vmem:[#allocation3 + $0x148] sm:$0xff]
        %v469 = vld [vmem:[#allocation3 + $0x150] sm:$0xff]
        %v470 = vld [vmem:[#allocation3 + $0x158] sm:$0xff]
        %v471 = vld [vmem:[#allocation3 + $0x160] sm:$0xff]
        %v472 = vld [vmem:[#allocation3 + $0x168] sm:$0xff]
        %v473 = vld [vmem:[#allocation3 + $0x170] sm:$0xff]
        %v474 = vld [vmem:[#allocation3 + $0x178] sm:$0xff]
        %v475 = vld [vmem:[%s426] sm:$0xff]
        %v476 = vld [vmem:[%s2] sm:$0xff]
        %v477 = vld [vmem:[%s2 + $0x8] sm:$0xff]
        %v478 = vld [vmem:[%s2 + $0x10] sm:$0xff]
        %v479 = vld [vmem:[%s2 + $0x18] sm:$0xff]
        %v480 = vld [vmem:[%s3] sm:$0xff]
        %v481 = vld [vmem:[%s3 + $0x8] sm:$0xff]
        %v482 = vld [vmem:[%s3 + $0x10] sm:$0xff]
        %v483 = vld [vmem:[%s3 + $0x18] sm:$0xff]
        %v484 = vld [vmem:[%s4] sm:$0xff]
        %v485 = vld [vmem:[%s4 + $0x8] sm:$0xff]
        %v486 = vld [vmem:[%s4 + $0x10] sm:$0xff]
        %v487 = vld [vmem:[%s4 + $0x18] sm:$0xff]
        %v488 = vld [vmem:[%s5] sm:$0xff]
        %v489 = vld [vmem:[%s5 + $0x8] sm:$0xff]
        %v490 = vld [vmem:[%s5 + $0x10] sm:$0xff]
        %v491 = vld [vmem:[%s5 + $0x18] sm:$0xff]
        %v492 = vld [vmem:[%s6] sm:$0xff]
        %v493 = vld [vmem:[%s6 + $0x8] sm:$0xff]
        %v494 = vld [vmem:[%s6 + $0x10] sm:$0xff]
        %v495 = vld [vmem:[%s6 + $0x18] sm:$0xff]
        %496 = vmatpush.msra.mxu0 %v472
        %497 = vmatpush.msra.mxu0 %v469
        %498 = vmatpush.msra.mxu0 %v466
        %499 = vmatpush.msra.mxu0 %v463
        %500 = vmatpush.msra.mxu0 %v460
        %501 = vmatpush.msra.mxu0 %v457
        %502 = vmatpush.msra.mxu0 %v454
        %503 = vmatpush.msra.mxu0 %v451
        %504 = vmatpush.msra.mxu0 %v448
        %505 = vmatpush.msra.mxu0 %v445
        %506 = vmatpush.msra.mxu0 %v442
        %507 = vmatpush.msra.mxu0 %v439
        %508 = vmatpush.msra.mxu0 %v436
        %509 = vmatpush.msra.mxu0 %v433
        %510 = vmatpush.msra.mxu0 %v430
        %511 = vmatpush.msra.mxu0 %v427
        %512 = vmatmul.f32.gmra.mxu0 %v475
        %v513 = vpop.f32.mrf.mxu0
        %v514 = vadd.f32 0.0, %v513
        %515 = vdwg.mxu0
        %516 = vmatpush.msra.mxu0 %v473
        %517 = vmatpush.msra.mxu0 %v470
        %518 = vmatpush.msra.mxu0 %v467
        %519 = vmatpush.msra.mxu0 %v464
        %520 = vmatpush.msra.mxu0 %v461
        %521 = vmatpush.msra.mxu0 %v458
        %522 = vmatpush.msra.mxu0 %v455
        %523 = vmatpush.msra.mxu0 %v452
        %524 = vmatpush.msra.mxu0 %v449
        %525 = vmatpush.msra.mxu0 %v446
        %526 = vmatpush.msra.mxu0 %v443
        %527 = vmatpush.msra.mxu0 %v440
        %528 = vmatpush.msra.mxu0 %v437
        %529 = vmatpush.msra.mxu0 %v434
        %530 = vmatpush.msra.mxu0 %v431
        %531 = vmatpush.msra.mxu0 %v428
        %532 = vmatmul.f32.gmra.mxu0 %v475
        %v533 = vpop.f32.mrf.mxu0
        %v534 = vadd.f32 0.0, %v533
        %535 = vdwg.mxu0
        %536 = vmatpush.msra.mxu0 %v474
        %537 = vmatpush.msra.mxu0 %v471
        %538 = vmatpush.msra.mxu0 %v468
        %539 = vmatpush.msra.mxu0 %v465
        %540 = vmatpush.msra.mxu0 %v462
        %541 = vmatpush.msra.mxu0 %v459
        %542 = vmatpush.msra.mxu0 %v456
        %543 = vmatpush.msra.mxu0 %v453
        %544 = vmatpush.msra.mxu0 %v450
        %545 = vmatpush.msra.mxu0 %v447
        %546 = vmatpush.msra.mxu0 %v444
        %547 = vmatpush.msra.mxu0 %v441
        %548 = vmatpush.msra.mxu0 %v438
        %549 = vmatpush.msra.mxu0 %v435
        %550 = vmatpush.msra.mxu0 %v432
        %551 = vmatpush.msra.mxu0 %v429
        %552 = vmatmul.f32.gmra.mxu0 %v475
        %v553 = vpop.f32.mrf.mxu0
        %v554 = vadd.f32 0.0, %v553
        %555 = vdwg.mxu0
        %vm556 = vcmask 64512
        %v558 = vsel %vm556, %v480, 0
        %v561 = vsel %vm556, %v481, 0
        %v564 = vsel %vm556, %v482, 0
        %v567 = vsel %vm556, %v483, 0
        %569 = vmatpush.msra.mxu0 0.0
        %570 = vmatpush.msra.mxu0 0.0
        %571 = vmatpush.msra.mxu0 0.0
        %572 = vmatpush.msra.mxu0 0.0
        %573 = vmatpush.msra.mxu0 0.0
        %574 = vmatpush.msra.mxu0 0.0
        %575 = vmatpush.msra.mxu0 0.0
        %576 = vmatpush.msra.mxu0 0.0
        %577 = vmatpush.msra.mxu0 0.0
        %578 = vmatpush.msra.mxu0 0.0
        %579 = vmatpush.msra.mxu0 0.0
        %580 = vmatpush.msra.mxu0 0.0
        %581 = vmatpush.msra.mxu0 0.0
        %582 = vmatpush.msra.mxu0 0.0
        %583 = vmatpush.msra.mxu0 0.0
        %584 = vmatpush.msra.mxu0 %v514
        %585 = vmatmul.f32.gmra.mxu0 %v558
        %v586 = vpop.f32.mrf.mxu0
        %v587 = vadd.f32 0.0, %v586
        %588 = vmatmul.f32.gmra.mxu0 %v561
        %v589 = vpop.f32.mrf.mxu0
        %v590 = vadd.f32 0.0, %v589
        %591 = vmatmul.f32.gmra.mxu0 %v564
        %v592 = vpop.f32.mrf.mxu0
        %v593 = vadd.f32 0.0, %v592
        %594 = vmatmul.f32.gmra.mxu0 %v567
        %v595 = vpop.f32.mrf.mxu0
        %v596 = vadd.f32 0.0, %v595
        %597 = vdwg.mxu0
        %v599 = vsel %vm556, %v476, 0
        %v602 = vsel %vm556, %v477, 0
        %v605 = vsel %vm556, %v478, 0
        %v608 = vsel %vm556, %v479, 0
        %610 = vmatpush.msra.mxu0 0.0
        %611 = vmatpush.msra.mxu0 0.0
        %612 = vmatpush.msra.mxu0 0.0
        %613 = vmatpush.msra.mxu0 0.0
        %614 = vmatpush.msra.mxu0 0.0
        %615 = vmatpush.msra.mxu0 0.0
        %616 = vmatpush.msra.mxu0 0.0
        %617 = vmatpush.msra.mxu0 0.0
        %618 = vmatpush.msra.mxu0 0.0
        %619 = vmatpush.msra.mxu0 0.0
        %620 = vmatpush.msra.mxu0 0.0
        %621 = vmatpush.msra.mxu0 0.0
        %622 = vmatpush.msra.mxu0 0.0
        %623 = vmatpush.msra.mxu0 0.0
        %624 = vmatpush.msra.mxu0 0.0
        %625 = vmatpush.msra.mxu0 %v475
        %626 = vmatmul.f32.gmra.mxu0 %v599
        %v627 = vpop.f32.mrf.mxu0
        %v628 = vadd.f32 %v587, %v627
        %629 = vmatmul.f32.gmra.mxu0 %v602
        %v630 = vpop.f32.mrf.mxu0
        %v631 = vadd.f32 %v590, %v630
        %632 = vmatmul.f32.gmra.mxu0 %v605
        %v633 = vpop.f32.mrf.mxu0
        %v634 = vadd.f32 %v593, %v633
        %635 = vmatmul.f32.gmra.mxu0 %v608
        %v636 = vpop.f32.mrf.mxu0
        %v637 = vadd.f32 %v596, %v636
        %638 = vdwg.mxu0
        %v640 = vsel %vm556, %v484, 0
        %v643 = vsel %vm556, %v485, 0
        %v646 = vsel %vm556, %v486, 0
        %v649 = vsel %vm556, %v487, 0
        %651 = vmatpush.msra.mxu0 0.0
        %652 = vmatpush.msra.mxu0 0.0
        %653 = vmatpush.msra.mxu0 0.0
        %654 = vmatpush.msra.mxu0 0.0
        %655 = vmatpush.msra.mxu0 0.0
        %656 = vmatpush.msra.mxu0 0.0
        %657 = vmatpush.msra.mxu0 0.0
        %658 = vmatpush.msra.mxu0 0.0
        %659 = vmatpush.msra.mxu0 0.0
        %660 = vmatpush.msra.mxu0 0.0
        %661 = vmatpush.msra.mxu0 0.0
        %662 = vmatpush.msra.mxu0 0.0
        %663 = vmatpush.msra.mxu0 0.0
        %664 = vmatpush.msra.mxu0 0.0
        %665 = vmatpush.msra.mxu0 0.0
        %666 = vmatpush.msra.mxu0 %v534
        %667 = vmatmul.f32.gmra.mxu0 %v640
        %v668 = vpop.f32.mrf.mxu0
        %v669 = vadd.f32 0.0, %v668
        %670 = vmatmul.f32.gmra.mxu0 %v643
        %v671 = vpop.f32.mrf.mxu0
        %v672 = vadd.f32 0.0, %v671
        %673 = vmatmul.f32.gmra.mxu0 %v646
        %v674 = vpop.f32.mrf.mxu0
        %v675 = vadd.f32 0.0, %v674
        %676 = vmatmul.f32.gmra.mxu0 %v649
        %v677 = vpop.f32.mrf.mxu0
        %v678 = vadd.f32 0.0, %v677
        %679 = vdwg.mxu0
        %v680 = vadd.f32 %v628, %v669
        %v681 = vadd.f32 %v631, %v672
        %v682 = vadd.f32 %v634, %v675
        %v683 = vadd.f32 %v637, %v678
        %v685 = vsel %vm556, %v488, 0
        %v688 = vsel %vm556, %v489, 0
        %v691 = vsel %vm556, %v490, 0
        %v694 = vsel %vm556, %v491, 0
        %696 = vmatpush.msra.mxu0 0.0
        %697 = vmatpush.msra.mxu0 0.0
        %698 = vmatpush.msra.mxu0 0.0
        %699 = vmatpush.msra.mxu0 0.0
        %700 = vmatpush.msra.mxu0 0.0
        %701 = vmatpush.msra.mxu0 0.0
        %702 = vmatpush.msra.mxu0 0.0
        %703 = vmatpush.msra.mxu0 0.0
        %704 = vmatpush.msra.mxu0 0.0
        %705 = vmatpush.msra.mxu0 0.0
        %706 = vmatpush.msra.mxu0 0.0
        %707 = vmatpush.msra.mxu0 0.0
        %708 = vmatpush.msra.mxu0 0.0
        %709 = vmatpush.msra.mxu0 0.0
        %710 = vmatpush.msra.mxu0 0.0
        %711 = vmatpush.msra.mxu0 %v554
        %712 = vmatmul.f32.gmra.mxu0 %v685
        %v713 = vpop.f32.mrf.mxu0
        %v714 = vadd.f32 0.0, %v713
        %715 = vmatmul.f32.gmra.mxu0 %v688
        %v716 = vpop.f32.mrf.mxu0
        %v717 = vadd.f32 0.0, %v716
        %718 = vmatmul.f32.gmra.mxu0 %v691
        %v719 = vpop.f32.mrf.mxu0
        %v720 = vadd.f32 0.0, %v719
        %721 = vmatmul.f32.gmra.mxu0 %v694
        %v722 = vpop.f32.mrf.mxu0
        %v723 = vadd.f32 0.0, %v722
        %724 = vdwg.mxu0
        %v725 = vadd.f32 %v680, %v714
        %v726 = vadd.f32 %v681, %v717
        %v727 = vadd.f32 %v682, %v720
        %v728 = vadd.f32 %v683, %v723
        %730 = vset.pattern.permute.xlu0 0
        %731 = vperm.xlu0 %730, %v492
        %v732 = vpop.permute.xlu0 %731
        %735 = vset.pattern.permute.xlu0 0
        %736 = vperm.xlu0 %735, %v493
        %v737 = vpop.permute.xlu0 %736
        %740 = vset.pattern.permute.xlu0 0
        %741 = vperm.xlu0 %740, %v494
        %v742 = vpop.permute.xlu0 %741
        %745 = vset.pattern.permute.xlu0 0
        %746 = vperm.xlu0 %745, %v495
        %v747 = vpop.permute.xlu0 %746
        %v749 = vadd.f32 %v725, %v732
        %v750 = vadd.f32 %v726, %v737
        %v751 = vadd.f32 %v727, %v742
        %v752 = vadd.f32 %v728, %v747
        %v753 = vmax.f32 %v749, 0.0
        %v754 = vmax.f32 %v750, 0.0
        %v755 = vmax.f32 %v751, 0.0
        %v756 = vmax.f32 %v752, 0.0
        %v757 = vld [vmem:[%s7] sm:$0x1]
        %v758 = vld [vmem:[%s8] sm:$0x1]
        %v759 = vld [vmem:[%s9] sm:$0x1]
        %v760 = vld [vmem:[%s10] sm:$0x1]
        %v761 = vld [vmem:[#allocation2] sm:$0x1]
        %762 = vmatpush.msra.mxu0 %v472
        %763 = vmatpush.msra.mxu0 %v469
        %764 = vmatpush.msra.mxu0 %v466
        %765 = vmatpush.msra.mxu0 %v463
        %766 = vmatpush.msra.mxu0 %v460
        %767 = vmatpush.msra.mxu0 %v457
        %768 = vmatpush.msra.mxu0 %v454
        %769 = vmatpush.msra.mxu0 %v451
        %770 = vmatpush.msra.mxu0 %v448
        %771 = vmatpush.msra.mxu0 %v445
        %772 = vmatpush.msra.mxu0 %v442
        %773 = vmatpush.msra.mxu0 %v439
        %774 = vmatpush.msra.mxu0 %v436
        %775 = vmatpush.msra.mxu0 %v433
        %776 = vmatpush.msra.mxu0 %v430
        %777 = vmatpush.msra.mxu0 %v427
        %778 = vmatmul.f32.gmra.mxu0 %v753
        %v779 = vpop.f32.mrf.mxu0
        %v780 = vadd.f32 0.0, %v779
        %781 = vmatmul.f32.gmra.mxu0 %v754
        %v782 = vpop.f32.mrf.mxu0
        %v783 = vadd.f32 0.0, %v782
        %784 = vmatmul.f32.gmra.mxu0 %v755
        %v785 = vpop.f32.mrf.mxu0
        %v786 = vadd.f32 0.0, %v785
        %787 = vmatmul.f32.gmra.mxu0 %v756
        %v788 = vpop.f32.mrf.mxu0
        %v789 = vadd.f32 0.0, %v788
        %790 = vdwg.mxu0
        %791 = vmatpush.msra.mxu0 %v473
        %792 = vmatpush.msra.mxu0 %v470
        %793 = vmatpush.msra.mxu0 %v467
        %794 = vmatpush.msra.mxu0 %v464
        %795 = vmatpush.msra.mxu0 %v461
        %796 = vmatpush.msra.mxu0 %v458
        %797 = vmatpush.msra.mxu0 %v455
        %798 = vmatpush.msra.mxu0 %v452
        %799 = vmatpush.msra.mxu0 %v449
        %800 = vmatpush.msra.mxu0 %v446
        %801 = vmatpush.msra.mxu0 %v443
        %802 = vmatpush.msra.mxu0 %v440
        %803 = vmatpush.msra.mxu0 %v437
        %804 = vmatpush.msra.mxu0 %v434
        %805 = vmatpush.msra.mxu0 %v431
        %806 = vmatpush.msra.mxu0 %v428
        %807 = vmatmul.f32.gmra.mxu0 %v753
        %v808 = vpop.f32.mrf.mxu0
        %v809 = vadd.f32 0.0, %v808
        %810 = vmatmul.f32.gmra.mxu0 %v754
        %v811 = vpop.f32.mrf.mxu0
        %v812 = vadd.f32 0.0, %v811
        %813 = vmatmul.f32.gmra.mxu0 %v755
        %v814 = vpop.f32.mrf.mxu0
        %v815 = vadd.f32 0.0, %v814
        %816 = vmatmul.f32.gmra.mxu0 %v756
        %v817 = vpop.f32.mrf.mxu0
        %v818 = vadd.f32 0.0, %v817
        %819 = vdwg.mxu0
        %820 = vmatpush.msra.mxu0 %v474
        %821 = vmatpush.msra.mxu0 %v471
        %822 = vmatpush.msra.mxu0 %v468
        %823 = vmatpush.msra.mxu0 %v465
        %824 = vmatpush.msra.mxu0 %v462
        %825 = vmatpush.msra.mxu0 %v459
        %826 = vmatpush.msra.mxu0 %v456
        %827 = vmatpush.msra.mxu0 %v453
        %828 = vmatpush.msra.mxu0 %v450
        %829 = vmatpush.msra.mxu0 %v447
        %830 = vmatpush.msra.mxu0 %v444
        %831 = vmatpush.msra.mxu0 %v441
        %832 = vmatpush.msra.mxu0 %v438
        %833 = vmatpush.msra.mxu0 %v435
        %834 = vmatpush.msra.mxu0 %v432
        %835 = vmatpush.msra.mxu0 %v429
        %836 = vmatmul.f32.gmra.mxu0 %v753
        %v837 = vpop.f32.mrf.mxu0
        %v838 = vadd.f32 0.0, %v837
        %839 = vmatmul.f32.gmra.mxu0 %v754
        %v840 = vpop.f32.mrf.mxu0
        %v841 = vadd.f32 0.0, %v840
        %842 = vmatmul.f32.gmra.mxu0 %v755
        %v843 = vpop.f32.mrf.mxu0
        %v844 = vadd.f32 0.0, %v843
        %845 = vmatmul.f32.gmra.mxu0 %v756
        %v846 = vpop.f32.mrf.mxu0
        %v847 = vadd.f32 0.0, %v846
        %848 = vdwg.mxu0
        %vm849 = vcmask 261120
        %v851 = vsel %vm849, %v758, 0
        %853 = vmatpush.msra.mxu0 0.0
        %854 = vmatpush.msra.mxu0 0.0
        %855 = vmatpush.msra.mxu0 0.0
        %856 = vmatpush.msra.mxu0 0.0
        %857 = vmatpush.msra.mxu0 0.0
        %858 = vmatpush.msra.mxu0 0.0
        %859 = vmatpush.msra.mxu0 0.0
        %860 = vmatpush.msra.mxu0 0.0
        %861 = vmatpush.msra.mxu0 0.0
        %862 = vmatpush.msra.mxu0 0.0
        %863 = vmatpush.msra.mxu0 0.0
        %864 = vmatpush.msra.mxu0 0.0
        %865 = vmatpush.msra.mxu0 %v789
        %866 = vmatpush.msra.mxu0 %v786
        %867 = vmatpush.msra.mxu0 %v783
        %868 = vmatpush.msra.mxu0 %v780
        %869 = vmatmul.f32.gmra.mxu0 %v851
        %v870 = vpop.f32.mrf.mxu0
        %v871 = vadd.f32 0.0, %v870
        %872 = vdwg.mxu0
        %v874 = vsel %vm849, %v757, 0
        %876 = vmatpush.msra.mxu0 0.0
        %877 = vmatpush.msra.mxu0 0.0
        %878 = vmatpush.msra.mxu0 0.0
        %879 = vmatpush.msra.mxu0 0.0
        %880 = vmatpush.msra.mxu0 0.0
        %881 = vmatpush.msra.mxu0 0.0
        %882 = vmatpush.msra.mxu0 0.0
        %883 = vmatpush.msra.mxu0 0.0
        %884 = vmatpush.msra.mxu0 0.0
        %885 = vmatpush.msra.mxu0 0.0
        %886 = vmatpush.msra.mxu0 0.0
        %887 = vmatpush.msra.mxu0 0.0
        %888 = vmatpush.msra.mxu0 %v756
        %889 = vmatpush.msra.mxu0 %v755
        %890 = vmatpush.msra.mxu0 %v754
        %891 = vmatpush.msra.mxu0 %v753
        %892 = vmatmul.f32.gmra.mxu0 %v874
        %v893 = vpop.f32.mrf.mxu0
        %v894 = vadd.f32 %v871, %v893
        %895 = vdwg.mxu0
        %v897 = vsel %vm849, %v759, 0
        %899 = vmatpush.msra.mxu0 0.0
        %900 = vmatpush.msra.mxu0 0.0
        %901 = vmatpush.msra.mxu0 0.0
        %902 = vmatpush.msra.mxu0 0.0
        %903 = vmatpush.msra.mxu0 0.0
        %904 = vmatpush.msra.mxu0 0.0
        %905 = vmatpush.msra.mxu0 0.0
        %906 = vmatpush.msra.mxu0 0.0
        %907 = vmatpush.msra.mxu0 0.0
        %908 = vmatpush.msra.mxu0 0.0
        %909 = vmatpush.msra.mxu0 0.0
        %910 = vmatpush.msra.mxu0 0.0
        %911 = vmatpush.msra.mxu0 %v818
        %912 = vmatpush.msra.mxu0 %v815
        %913 = vmatpush.msra.mxu0 %v812
        %914 = vmatpush.msra.mxu0 %v809
        %915 = vmatmul.f32.gmra.mxu0 %v897
        %v916 = vpop.f32.mrf.mxu0
        %v917 = vadd.f32 0.0, %v916
        %918 = vdwg.mxu0
        %v919 = vadd.f32 %v894, %v917
        %v921 = vsel %vm849, %v760, 0
        %923 = vmatpush.msra.mxu0 0.0
        %924 = vmatpush.msra.mxu0 0.0
        %925 = vmatpush.msra.mxu0 0.0
        %926 = vmatpush.msra.mxu0 0.0
        %927 = vmatpush.msra.mxu0 0.0
        %928 = vmatpush.msra.mxu0 0.0
        %929 = vmatpush.msra.mxu0 0.0
        %930 = vmatpush.msra.mxu0 0.0
        %931 = vmatpush.msra.mxu0 0.0
        %932 = vmatpush.msra.mxu0 0.0
        %933 = vmatpush.msra.mxu0 0.0
        %934 = vmatpush.msra.mxu0 0.0
        %935 = vmatpush.msra.mxu0 %v847
        %936 = vmatpush.msra.mxu0 %v844
        %937 = vmatpush.msra.mxu0 %v841
        %938 = vmatpush.msra.mxu0 %v838
        %939 = vmatmul.f32.gmra.mxu0 %v921
        %v940 = vpop.f32.mrf.mxu0
        %v941 = vadd.f32 0.0, %v940
        %942 = vdwg.mxu0
        %v943 = vadd.f32 %v919, %v941
        %945 = vset.pattern.permute.xlu0 0
        %946 = vperm.xlu0 %945, %v761
        %v947 = vpop.permute.xlu0 %946
        %v949 = vperm.slane %v947, 0
        %v950 = vadd.f32 %v943, %v949
        %v951 = vxor.u32 %v950, 2147483648
        %v952 = vmul.f32 %v951, 1.442695
        %v953 = vpow.pop %v952
        %v954 = vadd.f32 %v953, 1.0
        %v955 = vrcp.pop %v954
        %v956 = vmul.f32 %v954, %v955
        %v957 = vsub.f32 1.0, %v956
        %v958 = vmul.f32 %v955, %v957
        %v959 = vadd.f32 %v955, %v958
        %vm960 = vweird.f32 %v954
        %vm961 = vweird.f32 %v955
        %vm962 = vmor %vm960, %vm961
        %v963 = vsel %vm962, %v955, %v959
        %v964 = vand.u32 2147483647, %v954
        %vm965 = vcmp.eq.f32.partialorder %v964, 8.507059e+37
        %v966 = vand.u32 %v954, 2147483648
        %v967 = vor.u32 1.1754944e-38, %v966
        %v968 = vsel %vm965, %v967, %v963
        %v969 = vmul.f32 1.0, %v968
        %970 = vst [vmem:[%s422] sm:$0x1] %v969
        %s971 = sand.u32 %s294, 1
        %s972 = scalar_lea.sflag [#allocation5], %s971
        %s973 = sand.u32 %s294, 1
        %s974 = scalar_lea.vmem [#allocation6], %s973
        // Predicated region
        $region73: #{tpu_custom_call.1} parent=67 // pred_check
          %p975 = pneg %p304
        $region74: #{tpu_custom_call.1} parent=67 // pred_check_branch
          %977 = sbr.rel (%p975) target = $region76
        $region75: #{tpu_custom_call.1} parent=67 // pred_region
          %979 = vsyncadd %s972, 0
          %s980 = scalar_lea.hbm %s12, %s29
          %s982 = sshll.u32 %s974, 4
          %s983 = int_to_ptr.vmem [resolvable:$true] %s982
          %s984 = sshll.u32 %s980, 4
          %s985 = int_to_ptr.hbm [resolvable:$true] %s984
          %987 = dma.vmem_to_hbm [thread:$0]  %s983, 16, %s985, %s972
        $region76: #{tpu_custom_call.1} parent=67 // pred_fallthru
          _
      $region68: #{tpu_custom_call.1} parent=5 // pred_fallthru
        _
      %p988 = scmp.le.s32.totalorder 2, %s24
      // Predicated region
      $region77: #{tpu_custom_call.1} parent=5 // pred_check
        %p989 = pneg %p988
      $region78: #{tpu_custom_call.1} parent=5 // pred_check_branch
        %991 = sbr.rel (%p989) target = $region80
      $region79: #{tpu_custom_call.1} parent=5 // pred_region
        %s992 = ssub.s32 %s24, 2
        // Predicated region
        $region81: #{tpu_custom_call.1} parent=79 // pred_check
          %p993 = pneg %p310
        $region82: #{tpu_custom_call.1} parent=79 // pred_check_branch
          %995 = sbr.rel (%p993) target = $region84
        $region83: #{tpu_custom_call.1} parent=79 // pred_region
          %s996 = sand.u32 %s295, 1
          %s997 = scalar_lea.sflag [#allocation5], %s996
          %s998 = sand.u32 %s295, 1
          %s999 = scalar_lea.vmem [#allocation6], %s998
          %1001 = dma.done %s997, 16
        $region84: #{tpu_custom_call.1} parent=79 // pred_fallthru
          _
      $region80: #{tpu_custom_call.1} parent=5 // pred_fallthru
        _
    $region6: #{tpu_custom_call.1} parent=1 // loop_footer
      %s28 = sadd.s32 1, %s24
    $region7: #{tpu_custom_call.1} parent=1 // loop_footer_branch
      %23 = sbr.rel target = $region3
    $region8: #{tpu_custom_call.1} parent=1 // loop_exit
      _
    %1002 = vsyncpa [#allocation4], 1
    %s1003 = scalar_lea.sflag [#allocation4], 1
    %1004 = vsyncpa %s1003, 1
    %1005 = vsyncpa [#allocation5], 1
    %s1006 = scalar_lea.sflag [#allocation5], 1
    %1007 = vsyncpa %s1006, 1

</llo_original>
